<compile_context>
chip_gen: v5e
topology: v5e:2x2
jax: 0.10.0
libtpu: 0.0.40
codegen_flags: <defaults>
</compile_context>

<pallas_src>
import functools
import math

import jax
import jax.numpy as jnp
from jax import lax
from jax.experimental import pallas as pl
from jax.experimental.pallas import tpu as pltpu


# ----------------------------------------------------------------------------
# helpers
# ----------------------------------------------------------------------------
def _round_up(x: int, m: int) -> int:
    return ((x + m - 1) // m) * m


def _choose_tile(dim: int, pref: int, align: int) -> int:
    """Tile size for a (possibly padded) matmul dimension.  If dim <= pref use
    a single padded tile; otherwise the largest align-multiple <= pref dividing
    dim, falling back to an align-multiple (the wrapper pads the array)."""
    if dim <= pref:
        return _round_up(dim, align)
    t = (pref // align) * align
    while t >= align:
        if dim % t == 0:
            return t
        t -= align
    return (pref // align) * align


def _seq_tile(S: int, pref: int, align: int) -> int:
    """Sequence tile for attention (divisor of S; full S as fallback)."""
    if S <= pref:
        return S
    t = (pref // align) * align
    while t >= align:
        if S % t == 0:
            return t
        t -= align
    # TODO(synk): pad ragged sequence lengths instead of whole-S fallback.
    return S


# ----------------------------------------------------------------------------
# Tiled linear kernel: y = x @ w (+ bias) (+ relu) (+ residual)
# ----------------------------------------------------------------------------
def _linear_kernel(*refs, relu: bool, has_bias: bool, has_res: bool):
    x_ref, w_ref = refs[0], refs[1]
    i = 2
    b_ref = None
    r_ref = None
    if has_bias:
        b_ref = refs[i]
        i += 1
    if has_res:
        r_ref = refs[i]
        i += 1
    o_ref, acc_ref = refs[i], refs[i + 1]

    @pl.when(pl.program_id(2) == 0)
    def _():
        acc_ref[...] = jnp.zeros_like(acc_ref)

    acc_ref[...] += jnp.dot(x_ref[...], w_ref[...],
                            preferred_element_type=jnp.float32)

    @pl.when(pl.program_id(2) == pl.num_programs(2) - 1)
    def _():
        y = acc_ref[...]
        if has_bias:
            y = y + b_ref[...]                    # [1, tn] broadcasts over rows
        if relu:
            y = jnp.maximum(y, 0.0)
        if has_res:
            y = y + r_ref[...].astype(jnp.float32)
        o_ref[...] = y.astype(o_ref.dtype)


def linear(x2d, w, b=None, residual=None, relu=False, out_dtype=None,
           tm_pref=512, tn_pref=512, tk_pref=1024):
    """x: [M,K] (compute dtype), w: [K,N] (pre-cast to compute dtype),
    b: [N] f32, residual: [M,N].  f32 accumulator; output written directly in
    out_dtype (no wrapper casts).  Non-divisible dims are zero padded."""
    M, K = x2d.shape
    K2, N = w.shape
    assert K == K2
    if out_dtype is None:
        out_dtype = x2d.dtype
    if w.dtype != x2d.dtype:       # no-op when weights were pre-cast correctly
        w = w.astype(x2d.dtype)

    sub = 16 if jnp.dtype(x2d.dtype).itemsize < 4 else 8   # bf16 sublane packing
    tm = _choose_tile(M, tm_pref, sub)
    tn = _choose_tile(N, tn_pref, 128)
    tk = _choose_tile(K, tk_pref, 128)
    Mp, Np, Kp = _round_up(M, tm), _round_up(N, tn), _round_up(K, tk)

    x_p = jnp.pad(x2d, ((0, Mp - M), (0, Kp - K))) if (Mp, Kp) != (M, K) else x2d
    w_p = jnp.pad(w, ((0, Kp - K), (0, Np - N))) if (Kp, Np) != (K, N) else w

    grid = (Mp // tm, Np // tn, Kp // tk)
    in_specs = [
        pl.BlockSpec((tm, tk), lambda i, j, k: (i, k)),
        pl.BlockSpec((tk, tn), lambda i, j, k: (k, j)),
    ]
    args = [x_p, w_p]
    if b is not None:
        b_p = b.reshape(1, N).astype(jnp.float32)
        if Np != N:
            b_p = jnp.pad(b_p, ((0, 0), (0, Np - N)))
        in_specs.append(pl.BlockSpec((1, tn), lambda i, j, k: (0, j)))
        args.append(b_p)
    if residual is not None:
        r_p = residual
        if (Mp, Np) != residual.shape:
            r_p = jnp.pad(residual, ((0, Mp - M), (0, Np - N)))
        in_specs.append(pl.BlockSpec((tm, tn), lambda i, j, k: (i, j)))
        args.append(r_p)

    kernel = functools.partial(_linear_kernel, relu=relu,
                               has_bias=b is not None,
                               has_res=residual is not None)

    in_item = jnp.dtype(x2d.dtype).itemsize
    out_item = jnp.dtype(out_dtype).itemsize
    cost = pl.CostEstimate(
        flops=2 * Mp * Np * Kp,
        transcendentals=0,
        bytes_accessed=(Mp * Kp + Kp * Np) * in_item + Mp * Np * out_item,
    )

    out = pl.pallas_call(
        kernel,
        out_shape=jax.ShapeDtypeStruct((Mp, Np), out_dtype),
        grid=grid,
        in_specs=in_specs,
        out_specs=pl.BlockSpec((tm, tn), lambda i, j, k: (i, j)),
        scratch_shapes=[pltpu.VMEM((tm, tn), jnp.float32)],
        compiler_params=pltpu.CompilerParams(
            dimension_semantics=("parallel", "parallel", "arbitrary"),
            vmem_limit_bytes=48 * 1024 * 1024),
        cost_estimate=cost,
    )(*args)
    if (Mp, Np) != (M, N):
        out = out[:M, :N]
    return out


# ----------------------------------------------------------------------------
# Blocked flash (online-softmax) causal attention on the fused QKV slab
# ----------------------------------------------------------------------------
def _flash_attn_kernel(qkv_q_ref, qkv_kv_ref, o_ref, m_sc, l_sc, acc_sc,
                       *, n_heads: int, d_model: int, scale: float):
    qi = pl.program_id(1)
    ki = pl.program_id(2)
    tq = qkv_q_ref.shape[1]
    tkv = qkv_kv_ref.shape[1]
    dk = d_model // n_heads

    @pl.when(ki == 0)
    def _():
        m_sc[...] = jnp.full(m_sc.shape, -jnp.inf, dtype=m_sc.dtype)
        l_sc[...] = jnp.zeros_like(l_sc)
        acc_sc[...] = jnp.zeros_like(acc_sc)

    # Skip kv tiles that lie entirely in the (causally masked) future.
    @pl.when(ki * tkv < (qi + 1) * tq)
    def _():
        q_slab = qkv_q_ref[0]                       # (tq, 3D) compute dtype
        kv_slab = qkv_kv_ref[0]                     # (tkv, 3D)
        row = qi * tq + lax.broadcasted_iota(jnp.int32, (tq, tkv), 0)
        col = ki * tkv + lax.broadcasted_iota(jnp.int32, (tq, tkv), 1)
        causal = row >= col
        for h in range(n_heads):
            q = q_slab[:, h * dk:(h + 1) * dk]
            k = kv_slab[:, d_model + h * dk:d_model + (h + 1) * dk]
            v = kv_slab[:, 2 * d_model + h * dk:2 * d_model + (h + 1) * dk]
            # q @ k^T without materializing k.T (contract dk of both), f32 scores.
            s = lax.dot_general(q, k, (((1,), (1,)), ((), ())),
                                preferred_element_type=jnp.float32) * scale
            s = jnp.where(causal, s, -10000.0)      # matches reference masked_fill
            m_prev = m_sc[h]
            m_new = jnp.maximum(m_prev, jnp.max(s, axis=-1, keepdims=True))
            alpha = jnp.exp(m_prev - m_new)
            e = jnp.exp(s - m_new)
            l_sc[h] = alpha * l_sc[h] + jnp.sum(e, axis=-1, keepdims=True)
            pv = jnp.dot(e.astype(v.dtype), v, preferred_element_type=jnp.float32)
            acc_sc[:, h * dk:(h + 1) * dk] = (
                alpha * acc_sc[:, h * dk:(h + 1) * dk] + pv)
            m_sc[h] = m_new

    @pl.when(ki == pl.num_programs(2) - 1)
    def _():
        # Deferred normalization; one lane-dense full-width store of all heads.
        outs = []
        for h in range(n_heads):
            inv = pl.reciprocal(l_sc[h], approx=True)       # EUP slot
            outs.append(acc_sc[:, h * dk:(h + 1) * dk] * inv)
        o_ref[0] = jnp.concatenate(outs, axis=-1).astype(o_ref.dtype)


def causal_attention(qkv3d, n_heads, d_model, out_dtype=None,
                     tq_pref=256, tkv_pref=256):
    """qkv3d: [B, S, 3*D] fused Q|K|V projections -> attention out [B, S, D]."""
    B, S, threeD = qkv3d.shape
    assert threeD == 3 * d_model
    if out_dtype is None:
        out_dtype = qkv3d.dtype
    dk = d_model // n_heads
    scale = 1.0 / math.sqrt(dk)
    sub = 16 if jnp.dtype(qkv3d.dtype).itemsize < 4 else 8
    tq = _seq_tile(S, tq_pref, sub)
    tkv = _seq_tile(S, tkv_pref, sub)
    grid = (B, S // tq, S // tkv)

    item = jnp.dtype(qkv3d.dtype).itemsize
    cost = pl.CostEstimate(
        flops=4 * B * n_heads * S * S * dk,
        transcendentals=B * n_heads * S * S,
        bytes_accessed=B * S * threeD * item * (1 + S // tkv)
        + B * S * d_model * jnp.dtype(out_dtype).itemsize,
    )
    kernel = functools.partial(_flash_attn_kernel, n_heads=n_heads,
                               d_model=d_model, scale=scale)
    # qkv is passed twice: once indexed by the q-tile, once by the kv-tile.
    return pl.pallas_call(
        kernel,
        out_shape=jax.ShapeDtypeStruct((B, S, d_model), out_dtype),
        grid=grid,
        in_specs=[
            pl.BlockSpec((1, tq, threeD), lambda b, qi, ki: (b, qi, 0)),
            pl.BlockSpec((1, tkv, threeD), lambda b, qi, ki: (b, ki, 0)),
        ],
        out_specs=pl.BlockSpec((1, tq, d_model), lambda b, qi, ki: (b, qi, 0)),
        scratch_shapes=[
            pltpu.VMEM((n_heads, tq, 1), jnp.float32),   # m (running max)
            pltpu.VMEM((n_heads, tq, 1), jnp.float32),   # l (running denom)
            pltpu.VMEM((tq, d_model), jnp.float32),      # acc (all heads)
        ],
        compiler_params=pltpu.CompilerParams(
            dimension_semantics=("parallel", "parallel", "arbitrary"),
            vmem_limit_bytes=48 * 1024 * 1024),
        cost_estimate=cost,
    )(qkv3d, qkv3d)


# ----------------------------------------------------------------------------
# Row-tiled LayerNorm (f32 math, arbitrary in/out dtypes)
# ----------------------------------------------------------------------------
def _ln_kernel(x_ref, g_ref, b_ref, o_ref, *, eps: float):
    h = x_ref[...].astype(jnp.float32)
    mu = jnp.mean(h, axis=-1, keepdims=True)
    var = jnp.mean(jnp.square(h - mu), axis=-1, keepdims=True)
    y = (h - mu) * lax.rsqrt(var + eps) * g_ref[...] + b_ref[...]
    o_ref[...] = y.astype(o_ref.dtype)


def layernorm(x2d, gamma, beta, eps=1e-5, out_dtype=None, tm_pref=512):
    M, D = x2d.shape
    if out_dtype is None:
        out_dtype = x2d.dtype
    sub = 16 if jnp.dtype(x2d.dtype).itemsize < 4 else 8
    tm = _choose_tile(M, tm_pref, sub)
    Mp = _round_up(M, tm)
    x_p = jnp.pad(x2d, ((0, Mp - M), (0, 0))) if Mp != M else x2d
    out = pl.pallas_call(
        functools.partial(_ln_kernel, eps=eps),
        out_shape=jax.ShapeDtypeStruct((Mp, D), out_dtype),
        grid=(Mp // tm,),
        in_specs=[
            pl.BlockSpec((tm, D), lambda i: (i, 0)),
            pl.BlockSpec((1, D), lambda i: (0, 0)),
            pl.BlockSpec((1, D), lambda i: (0, 0)),
        ],
        out_specs=pl.BlockSpec((tm, D), lambda i: (i, 0)),
        compiler_params=pltpu.CompilerParams(
            dimension_semantics=("parallel",)),
    )(x_p, gamma.reshape(1, D).astype(jnp.float32),
      beta.reshape(1, D).astype(jnp.float32))
    return out[:M] if Mp != M else out


# ----------------------------------------------------------------------------
# Model glue (parameter setup, cheap reshapes) in plain JAX
# ----------------------------------------------------------------------------
def make_positional_encoding(max_seq, d_model):
    position = jnp.arange(max_seq, dtype=jnp.float32)[:, None]
    div_term = jnp.exp(
        jnp.arange(0, d_model, 2, dtype=jnp.float32) * (-math.log(10000.0) / d_model)
    )
    pe = jnp.zeros((max_seq, d_model), jnp.float32)
    pe = pe.at[:, 0::2].set(jnp.sin(position * div_term))
    pe = pe.at[:, 1::2].set(jnp.cos(position * div_term))
    return pe


def init_params(key, cfg):
    D, F, V = cfg["d_model"], cfg["d_ff"], cfg["vocab_size"]

    def normal(k, shape):
        return 0.02 * jax.random.normal(k, shape, jnp.float32)

    keys = iter(jax.random.split(key, 2 + 4 * cfg["n_layers"]))
    params = {
        "embed": normal(next(keys), (V, D)),
        "pe": make_positional_encoding(cfg["max_seq"], D),
        "lnf_g": jnp.ones((D,), jnp.float32),
        "lnf_b": jnp.zeros((D,), jnp.float32),
        "lm_head_w": normal(next(keys), (D, V)),    # stored [d_in, d_out]; no bias
        "blocks": [],
    }
    for _ in range(cfg["n_layers"]):
        blk = {
            "w_qkv": normal(next(keys), (D, 3 * D)), "b_qkv": jnp.zeros((3 * D,), jnp.float32),
            "wo": normal(next(keys), (D, D)), "bo": jnp.zeros((D,), jnp.float32),
            "w1": normal(next(keys), (D, F)), "b1": jnp.zeros((F,), jnp.float32),
            "w2": normal(next(keys), (F, D)), "b2": jnp.zeros((D,), jnp.float32),
            "ln1_g": jnp.ones((D,), jnp.float32), "ln1_b": jnp.zeros((D,), jnp.float32),
            "ln2_g": jnp.ones((D,), jnp.float32), "ln2_b": jnp.zeros((D,), jnp.float32),
        }
        params["blocks"].append(blk)
    return params


def cast_params(params, compute_dtype):
    """One-time cast of matmul weights / embedding / PE to the compute dtype.
    Biases and LayerNorm params stay f32 (consumed in f32 inside the kernels)."""
    if compute_dtype == jnp.float32:
        return params
    p = dict(params)
    p["embed"] = params["embed"].astype(compute_dtype)
    p["pe"] = params["pe"].astype(compute_dtype)
    p["lm_head_w"] = params["lm_head_w"].astype(compute_dtype)
    p["blocks"] = []
    for blk in params["blocks"]:
        b = dict(blk)
        for name in ("w_qkv", "wo", "w1", "w2"):
            b[name] = blk[name].astype(compute_dtype)
        p["blocks"].append(b)
    return p


def transformer_block(p, x, n_heads):
    B, S, D = x.shape
    x2 = x.reshape(B * S, D)

    # fused QKV projection: one [B*S, D] x [D, 3D] matmul (x read once)
    qkv = linear(x2, p["w_qkv"], p["b_qkv"])                         # [B*S, 3D]
    attn = causal_attention(qkv.reshape(B, S, 3 * D), n_heads, D)    # [B, S, D]
    # output projection with the residual add fused into its finalize step
    h_pre = linear(attn.reshape(B * S, D), p["wo"], p["bo"], residual=x2)
    h = layernorm(h_pre, p["ln1_g"], p["ln1_b"])                     # norm1(x + attn)

    ff = linear(h, p["w1"], p["b1"], relu=True)
    ff_pre = linear(ff, p["w2"], p["b2"], residual=h)                # + residual fused
    out = layernorm(ff_pre, p["ln2_g"], p["ln2_b"])                  # norm2(h + ff)
    return out.reshape(B, S, D)


def forward_pallas(params, cfg, input_ids):
    """params must already be cast via cast_params(); the compute dtype flows
    from the embedding table so no wrapper-side astype passes are emitted."""
    B, S = input_ids.shape
    D, V = cfg["d_model"], cfg["vocab_size"]
    # TODO(synk): embedding gather + positional-encoding add stay in plain JAX (glue).
    x = params["embed"][input_ids] + params["pe"][:S][None, :, :]
    for blk in params["blocks"]:
        x = transformer_block(blk, x, cfg["n_heads"])
    x2 = layernorm(x.reshape(B * S, D), params["lnf_g"], params["lnf_b"])
    # lm_head: bias-free, f32 logits; large tm so each vocab weight tile streams once
    logits = linear(x2, params["lm_head_w"], b=None, out_dtype=jnp.float32,
                    tm_pref=1024)
    return logits.reshape(B, S, V)


# ----------------------------------------------------------------------------
# Pure-JAX reference (mirrors the PyTorch forward) for correctness check
# ----------------------------------------------------------------------------
def forward_reference(params, cfg, input_ids):
    B, S = input_ids.shape
    D, H = cfg["d_model"], cfg["n_heads"]
    dk = D // H
    x = params["embed"][input_ids] + params["pe"][:S][None, :, :]

    causal = jnp.arange(S)[:, None] >= jnp.arange(S)[None, :]

    def ln(h, g, b, eps=1e-5):
        mu = jnp.mean(h, axis=-1, keepdims=True)
        var = jnp.mean(jnp.square(h - mu), axis=-1, keepdims=True)
        return (h - mu) / jnp.sqrt(var + eps) * g + b

    for p in params["blocks"]:
        qkv = x @ p["w_qkv"] + p["b_qkv"]
        q, k, v = jnp.split(qkv, 3, axis=-1)

        def split_heads(t):
            return t.reshape(B, S, H, dk).transpose(0, 2, 1, 3)

        q, k, v = split_heads(q), split_heads(k), split_heads(v)
        scores = jnp.einsum("bhqd,bhkd->bhqk", q, k) / math.sqrt(dk)
        scores = jnp.where(causal[None, None], scores, -10000.0)
        w = jax.nn.softmax(scores, axis=-1)
        attn = jnp.einsum("bhqk,bhkd->bhqd", w, v).transpose(0, 2, 1, 3).reshape(B, S, D)
        attn = attn @ p["wo"] + p["bo"]
        x = ln(x + attn, p["ln1_g"], p["ln1_b"])
        ff = jnp.maximum(x @ p["w1"] + p["b1"], 0.0) @ p["w2"] + p["b2"]
        x = ln(x + ff, p["ln2_g"], p["ln2_b"])
    x = ln(x, params["lnf_g"], params["lnf_b"])
    return x @ params["lm_head_w"]


# ----------------------------------------------------------------------------
if __name__ == "__main__":
    cfg = dict(vocab_size=16, max_seq=64, d_model=32, n_layers=2, n_heads=4, d_ff=64)

    key = jax.random.PRNGKey(0)
    k_params, k_ids = jax.random.split(key)
    params = init_params(k_params, cfg)

    batch, seq = 2, 8
    input_ids = jax.random.randint(k_ids, (batch, seq), 0, cfg["vocab_size"], dtype=jnp.int32)

    # f32 compute path: checked tightly against the pure-JAX reference.
    logits = jax.block_until_ready(
        forward_pallas(cast_params(params, jnp.float32), cfg, input_ids))
    ref = forward_reference(params, cfg, input_ids)
    assert logits.shape == (batch, seq, cfg["vocab_size"])
    assert jnp.allclose(logits, ref, atol=2e-3, rtol=2e-2), "mismatch vs reference"

    # bf16 MXU compute path (the perf configuration): weights pre-cast once,
    # bf16 activations end-to-end, f32 logits.
    params_bf16 = cast_params(params, jnp.bfloat16)
    logits_bf16 = jax.block_until_ready(forward_pallas(params_bf16, cfg, input_ids))
    assert logits_bf16.shape == (batch, seq, cfg["vocab_size"])
    assert logits_bf16.dtype == jnp.float32
    assert bool(jnp.all(jnp.isfinite(logits_bf16)))

    print("KERNEL_OK")
</pallas_src>

<mosaic_0001>
module attributes {stable_mosaic.version = 11 : i64} {
  func.func @_linear_kernel(%arg0: i32, %arg1: i32, %arg2: i32, %arg3: memref<16x128xf32, #tpu.memory_space<vmem>>, %arg4: memref<128x128xf32, #tpu.memory_space<vmem>>, %arg5: memref<1x128xf32, #tpu.memory_space<vmem>>, %arg6: memref<16x128xf32, #tpu.memory_space<vmem>>, %arg7: memref<16x128xf32, #tpu.memory_space<vmem>>) attributes {dimension_semantics = [#tpu.dimension_semantics<parallel>, #tpu.dimension_semantics<parallel>, #tpu.dimension_semantics<arbitrary>], iteration_bounds = array<i64: 1, 1, 1>, scalar_prefetch = 0 : i64, scratch_operands = 1 : i64, tpu.core_type = #tpu.core_type<tc>, window_params = [{transform_indices = @transform_0, window_bounds = array<i64: 16, 128>}, {transform_indices = @transform_1, window_bounds = array<i64: 128, 128>}, {transform_indices = @transform_2, window_bounds = array<i64: 1, 128>}, {transform_indices = @transform_3, window_bounds = array<i64: 16, 128>}]} {
    %c0_i32 = arith.constant 0 : i32
    %0 = arith.cmpi eq, %arg2, %c0_i32 : i32
    %1 = arith.extui %0 : i1 to i32
    %c0_i32_0 = arith.constant 0 : i32
    %2 = arith.cmpi ne, %1, %c0_i32_0 : i32
    scf.if %2 {
      %cst_10 = arith.constant 0.000000e+00 : f32
      %12 = vector.broadcast %cst_10 : f32 to vector<16x128xf32>
      %c0_11 = arith.constant 0 : index
      %c0_12 = arith.constant 0 : index
      %13 = vector.load %arg7[%c0_11, %c0_12] : memref<16x128xf32, #tpu.memory_space<vmem>>, vector<16x128xf32>
      tpu.vector_store %arg7[%c0_11, %c0_12], %12 {strides = array<i32>} : memref<16x128xf32, #tpu.memory_space<vmem>>, vector<16x128xf32>,
    } else {
    }
    %c0 = arith.constant 0 : index
    %c0_1 = arith.constant 0 : index
    %3 = vector.load %arg7[%c0, %c0_1] : memref<16x128xf32, #tpu.memory_space<vmem>>, vector<16x128xf32>
    %c0_2 = arith.constant 0 : index
    %c0_3 = arith.constant 0 : index
    %4 = vector.load %arg3[%c0_2, %c0_3] : memref<16x128xf32, #tpu.memory_space<vmem>>, vector<16x128xf32>
    %c0_4 = arith.constant 0 : index
    %c0_5 = arith.constant 0 : index
    %5 = vector.load %arg4[%c0_4, %c0_5] : memref<128x128xf32, #tpu.memory_space<vmem>>, vector<128x128xf32>
    %cst = arith.constant dense<0.000000e+00> : vector<16x128xf32>
    %6 = tpu.matmul %4, %5, %cst {dimension_numbers = #tpu.dot_dimension_numbers<[1], [0], [0], [1], [0, 0, 1, 1], [], []>} : vector<16x128xf32>, vector<128x128xf32>, vector<16x128xf32> -> vector<16x128xf32>
    %7 = arith.addf %3, %6 : vector<16x128xf32>
    %c0_6 = arith.constant 0 : index
    %c0_7 = arith.constant 0 : index
    %8 = vector.load %arg7[%c0_6, %c0_7] : memref<16x128xf32, #tpu.memory_space<vmem>>, vector<16x128xf32>
    tpu.vector_store %arg7[%c0_6, %c0_7], %7 {strides = array<i32>} : memref<16x128xf32, #tpu.memory_space<vmem>>, vector<16x128xf32>,
    %c0_i32_8 = arith.constant 0 : i32
    %9 = arith.cmpi eq, %arg2, %c0_i32_8 : i32
    %10 = arith.extui %9 : i1 to i32
    %c0_i32_9 = arith.constant 0 : i32
    %11 = arith.cmpi ne, %10, %c0_i32_9 : i32
    scf.if %11 {
      %c0_10 = arith.constant 0 : index
      %c0_11 = arith.constant 0 : index
      %12 = vector.load %arg7[%c0_10, %c0_11] : memref<16x128xf32, #tpu.memory_space<vmem>>, vector<16x128xf32>
      %c0_12 = arith.constant 0 : index
      %c0_13 = arith.constant 0 : index
      %13 = vector.load %arg5[%c0_12, %c0_13] : memref<1x128xf32, #tpu.memory_space<vmem>>, vector<1x128xf32>
      %14 = vector.broadcast %13 : vector<1x128xf32> to vector<16x128xf32>
      %15 = arith.addf %12, %14 : vector<16x128xf32>
      %c0_14 = arith.constant 0 : index
      %c0_15 = arith.constant 0 : index
      %16 = vector.load %arg6[%c0_14, %c0_15] : memref<16x128xf32, #tpu.memory_space<vmem>>, vector<16x128xf32>
      tpu.vector_store %arg6[%c0_14, %c0_15], %15 {strides = array<i32>} : memref<16x128xf32, #tpu.memory_space<vmem>>, vector<16x128xf32>,
    } else {
    }
    return
  }
  func.func @transform_0(%arg0: i32, %arg1: i32, %arg2: i32) -> (i32, i32) {
    %c0_i32 = arith.constant 0 : i32
    return %arg0, %arg2 : i32, i32
  }
  func.func @transform_1(%arg0: i32, %arg1: i32, %arg2: i32) -> (i32, i32) {
    %c0_i32 = arith.constant 0 : i32
    return %arg2, %arg1 : i32, i32
  }
  func.func @transform_2(%arg0: i32, %arg1: i32, %arg2: i32) -> (i32, i32) {
    %c0_i32 = arith.constant 0 : i32
    %c0_i32_0 = arith.constant 0 : i32
    return %c0_i32, %arg1 : i32, i32
  }
  func.func @transform_3(%arg0: i32, %arg1: i32, %arg2: i32) -> (i32, i32) {
    %c0_i32 = arith.constant 0 : i32
    return %arg0, %arg1 : i32, i32
  }
}

</mosaic_0001>

<llo_original>
// kernel: tpu_custom_call.1
$region0: #{tpu_custom_call.1}
  #allocation0 [shape = 'u32[]', space=smem, size = 0x4, offset = 0x4, fixed_abs, tag = 'smem constant byte address 0x4 - core index']
  #allocation1 [shape = 'u32[72,128]{1,0:T(1,128)}', space=vmem, size = 0x9000, scoped, tag = 'internal scratch']
  #allocation2 [shape = 'f32[16,128]{1,0:T(8,128)}', space=vmem, size = 0x2000, scoped, tag = 'scratch operand']
  %s0 = inlined_call_operand.hbm [shape: f32[16,128], index: 0, kind: input, shape index: {}]
  %s1 = inlined_call_operand.hbm [shape: f32[128,128], index: 1, kind: input, shape index: {}]
  %s2 = inlined_call_operand.vmem [shape: f32[1,128], index: 2, kind: input, shape index: {}]
  %s3 = inlined_call_operand.hbm [shape: f32[16,128], index: 3, kind: output, shape index: {}]
  %s4 = sld [smem:[#allocation0]]
  $region38: #{tpu_custom_call.1} parent=0
    _
  %s6 = ssub.s32 1, %s4
  %s7 = scalar_select 0, %s6, %s4
  $region1: #{tpu_custom_call.1} parent=0
    #allocation3 [shape = 'u8[8192]{0}', space=vmem, size = 0x2000, scoped, tag = 'input window, operand 0, single buffered']
    #allocation4 [shape = 's32[1]{0}', space=sflag, size = 0x4, scoped, tag = 'scoped memory for tpu_custom_call.1']
    #allocation5 [shape = 's32[1]{0}', space=sflag, size = 0x4, scoped, tag = 'scoped memory for tpu_custom_call.1']
    #allocation6 [shape = 'u8[65536]{0}', space=vmem, size = 0x10000, scoped, tag = 'input window, operand 1, single buffered']
    #allocation7 [shape = 's32[1]{0}', space=sflag, size = 0x4, scoped, tag = 'scoped memory for tpu_custom_call.1']
    #allocation8 [shape = 'u8[8192]{0}', space=vmem, size = 0x2000, scoped, tag = 'output window, operand 0, single buffered']
    %8 = vsyncpa [#allocation4], 0
    %9 = vsyncpa [#allocation7], 0
    %10 = vsyncpa [#allocation5], 0
    // Predicated region
    $region2: #{tpu_custom_call.1} parent=1 // pred_check
      _
    $region3: #{tpu_custom_call.1} parent=1 // pred_check_branch
      %12 = sbr.rel (0) target = $region5
    $region4: #{tpu_custom_call.1} parent=1 // pred_region
      %14 = vsyncadd [#allocation4], 0
      %s15 = sshll.u32 %s0, 4
      %s16 = int_to_ptr.hbm [resolvable:$true] %s15
      %s17 = sshll.u32 [#allocation3], 4
      %s18 = int_to_ptr.vmem [resolvable:$true] %s17
      %23 = dma.hbm_to_vmem [thread:$0]  %s16, 256, %s18, [#allocation4], 128, 128, 8
    $region5: #{tpu_custom_call.1} parent=1 // pred_fallthru
      _
    // Predicated region
    $region6: #{tpu_custom_call.1} parent=1 // pred_check
      _
    $region7: #{tpu_custom_call.1} parent=1 // pred_check_branch
      %25 = sbr.rel (0) target = $region9
    $region8: #{tpu_custom_call.1} parent=1 // pred_region
      %27 = vsyncadd [#allocation7], 0
      %s28 = sshll.u32 %s1, 4
      %s29 = int_to_ptr.hbm [resolvable:$true] %s28
      %s30 = sshll.u32 [#allocation6], 4
      %s31 = int_to_ptr.vmem [resolvable:$true] %s30
      %36 = dma.hbm_to_vmem [thread:$0]  %s29, 2048, %s31, [#allocation7], 128, 128, 8
    $region9: #{tpu_custom_call.1} parent=1 // pred_fallthru
      _
    // Predicated region
    $region10: #{tpu_custom_call.1} parent=1 // pred_check
      _
    $region11: #{tpu_custom_call.1} parent=1 // pred_check_branch
      %38 = sbr.rel (0) target = $region13
    $region12: #{tpu_custom_call.1} parent=1 // pred_region
      _
    $region13: #{tpu_custom_call.1} parent=1 // pred_fallthru
      _
    // Predicated region
    $region14: #{tpu_custom_call.1} parent=1 // pred_check
      _
    $region15: #{tpu_custom_call.1} parent=1 // pred_check_branch
      %40 = sbr.rel (0) target = $region17
    $region16: #{tpu_custom_call.1} parent=1 // pred_region
      %42 = dma.done [#allocation4], 256
    $region17: #{tpu_custom_call.1} parent=1 // pred_fallthru
      _
    // Predicated region
    $region18: #{tpu_custom_call.1} parent=1 // pred_check
      _
    $region19: #{tpu_custom_call.1} parent=1 // pred_check_branch
      %44 = sbr.rel (0) target = $region21
    $region20: #{tpu_custom_call.1} parent=1 // pred_region
      %46 = dma.done [#allocation7], 2048
    $region21: #{tpu_custom_call.1} parent=1 // pred_fallthru
      _
    %p47 = scmp.eq.s32.totalorder 0, 0
    // Predicated region
    $region22: #{tpu_custom_call.1} parent=1 // pred_check
      %p48 = pneg %p47
    $region23: #{tpu_custom_call.1} parent=1 // pred_check_branch
      %50 = sbr.rel (%p48) target = $region25
    $region24: #{tpu_custom_call.1} parent=1 // pred_region
      %51 = vst [vmem:[#allocation2] sm:$0xff] 0.0
      %52 = vst [vmem:[#allocation2 + $0x8] sm:$0xff] 0.0
    $region25: #{tpu_custom_call.1} parent=1 // pred_fallthru
      _
    %v53 = vld [vmem:[#allocation2] sm:$0xff]
    %v54 = vld [vmem:[#allocation2 + $0x8] sm:$0xff]
    %v55 = vld [vmem:[#allocation3] sm:$0xff]
    %v56 = vld [vmem:[#allocation3 + $0x8] sm:$0xff]
    %v57 = vld [vmem:[#allocation6] sm:$0xff]
    %v58 = vld [vmem:[#allocation6 + $0x8] sm:$0xff]
    %v59 = vld [vmem:[#allocation6 + $0x10] sm:$0xff]
    %v60 = vld [vmem:[#allocation6 + $0x18] sm:$0xff]
    %v61 = vld [vmem:[#allocation6 + $0x20] sm:$0xff]
    %v62 = vld [vmem:[#allocation6 + $0x28] sm:$0xff]
    %v63 = vld [vmem:[#allocation6 + $0x30] sm:$0xff]
    %v64 = vld [vmem:[#allocation6 + $0x38] sm:$0xff]
    %v65 = vld [vmem:[#allocation6 + $0x40] sm:$0xff]
    %v66 = vld [vmem:[#allocation6 + $0x48] sm:$0xff]
    %v67 = vld [vmem:[#allocation6 + $0x50] sm:$0xff]
    %v68 = vld [vmem:[#allocation6 + $0x58] sm:$0xff]
    %v69 = vld [vmem:[#allocation6 + $0x60] sm:$0xff]
    %v70 = vld [vmem:[#allocation6 + $0x68] sm:$0xff]
    %v71 = vld [vmem:[#allocation6 + $0x70] sm:$0xff]
    %v72 = vld [vmem:[#allocation6 + $0x78] sm:$0xff]
    %73 = vmatpush.msra.mxu0 %v72
    %74 = vmatpush.msra.mxu0 %v71
    %75 = vmatpush.msra.mxu0 %v70
    %76 = vmatpush.msra.mxu0 %v69
    %77 = vmatpush.msra.mxu0 %v68
    %78 = vmatpush.msra.mxu0 %v67
    %79 = vmatpush.msra.mxu0 %v66
    %80 = vmatpush.msra.mxu0 %v65
    %81 = vmatpush.msra.mxu0 %v64
    %82 = vmatpush.msra.mxu0 %v63
    %83 = vmatpush.msra.mxu0 %v62
    %84 = vmatpush.msra.mxu0 %v61
    %85 = vmatpush.msra.mxu0 %v60
    %86 = vmatpush.msra.mxu0 %v59
    %87 = vmatpush.msra.mxu0 %v58
    %88 = vmatpush.msra.mxu0 %v57
    %89 = vmatmul.f32.gmra.mxu0 %v55
    %v90 = vpop.f32.mrf.mxu0
    %v91 = vadd.f32 0.0, %v90
    %92 = vmatmul.f32.gmra.mxu0 %v56
    %v93 = vpop.f32.mrf.mxu0
    %v94 = vadd.f32 0.0, %v93
    %95 = vdwg.mxu0
    %v96 = vadd.f32 %v53, %v91
    %v97 = vadd.f32 %v54, %v94
    %98 = vst [vmem:[#allocation2] sm:$0xff] %v96
    %99 = vst [vmem:[#allocation2 + $0x8] sm:$0xff] %v97
    // Predicated region
    $region26: #{tpu_custom_call.1} parent=1 // pred_check
      %p100 = pneg %p47
    $region27: #{tpu_custom_call.1} parent=1 // pred_check_branch
      %102 = sbr.rel (%p100) target = $region29
    $region28: #{tpu_custom_call.1} parent=1 // pred_region
      %v103 = vld [vmem:[#allocation2] sm:$0xff]
      %v104 = vld [vmem:[#allocation2 + $0x8] sm:$0xff]
      %v105 = vld [vmem:[%s2] sm:$0x1]
      %v107 = vperm.slane %v105, 0
      %v109 = vadd.f32 %v103, %v107
      %v110 = vadd.f32 %v104, %v107
      %111 = vst [vmem:[#allocation8] sm:$0xff] %v109
      %112 = vst [vmem:[#allocation8 + $0x8] sm:$0xff] %v110
    $region29: #{tpu_custom_call.1} parent=1 // pred_fallthru
      _
    // Predicated region
    $region30: #{tpu_custom_call.1} parent=1 // pred_check
      _
    $region31: #{tpu_custom_call.1} parent=1 // pred_check_branch
      %114 = sbr.rel (0) target = $region33
    $region32: #{tpu_custom_call.1} parent=1 // pred_region
      %116 = vsyncadd [#allocation5], 0
      %s117 = sshll.u32 [#allocation8], 4
      %s118 = int_to_ptr.vmem [resolvable:$true] %s117
      %s119 = sshll.u32 %s3, 4
      %s120 = int_to_ptr.hbm [resolvable:$true] %s119
      %125 = dma.vmem_to_hbm [thread:$0]  %s118, 256, %s120, [#allocation5], 128, 128, 8
    $region33: #{tpu_custom_call.1} parent=1 // pred_fallthru
      _
    // Predicated region
    $region34: #{tpu_custom_call.1} parent=1 // pred_check
      _
    $region35: #{tpu_custom_call.1} parent=1 // pred_check_branch
      %127 = sbr.rel (0) target = $region37
    $region36: #{tpu_custom_call.1} parent=1 // pred_region
      %129 = dma.done [#allocation5], 256
    $region37: #{tpu_custom_call.1} parent=1 // pred_fallthru
      _
    %130 = vsyncpa [#allocation4], 1
    %131 = vsyncpa [#allocation7], 1
    %132 = vsyncpa [#allocation5], 1

</llo_original>
